<compile_context>
chip_gen: v5e
topology: v5e:2x2
jax: 0.10.0
libtpu: 0.0.40
codegen_flags: <defaults>
</compile_context>

<pallas_src>
import functools

import jax
import jax.numpy as jnp
from jax.experimental import pallas as pl
from jax.experimental.pallas import tpu as pltpu


def _round_up(v, m):
    return ((v + m - 1) // m) * m


def _pad_and_tile(dim, pref_tile, mult):
    """Return (padded_dim, tile) with tile dividing padded_dim and tile % mult == 0
    (or tile == padded_dim, which is always legal)."""
    if dim >= pref_tile:
        return _round_up(dim, pref_tile), pref_tile
    padded = _round_up(dim, mult)
    return padded, padded


def _pad2d(arr, rows, cols):
    r, c = arr.shape
    if r == rows and c == cols:
        return arr
    return jnp.pad(arr, ((0, rows - r), (0, cols - c)))


def _fit_rows(x, rows):
    r = x.shape[0]
    if r < rows:
        return jnp.pad(x, ((0, rows - r), (0, 0)))
    return x[:rows] if r > rows else x


def _fit_cols(x, cols):
    c = x.shape[1]
    if c < cols:
        return jnp.pad(x, ((0, 0), (0, cols - c)))
    return x[:, :cols] if c > cols else x


def _vmem_limit_bytes():
    """Scoped-VMEM limit with headroom, adapted to the chip (v7x: 64 MiB/TC)."""
    try:
        cap = pltpu.get_tpu_info().vmem_capacity_bytes
    except Exception:
        cap = 64 * 1024 * 1024
    return int(min(cap * 3 // 4, 96 * 1024 * 1024))


# ---------------- kernels ----------------

def _aggregate_kernel(a_ref, xw_ref, nd_ref, b_ref, o_ref, acc_ref, *, apply_relu):
    """Transform-first: XW precomputed; out[i,j] = (sum_k A[i,k] @ XW[k,j]) * nd + b."""
    k = pl.program_id(2)

    @pl.when(k == 0)
    def _init():
        acc_ref[...] = jnp.zeros_like(acc_ref)

    acc_ref[...] += jnp.dot(a_ref[...], xw_ref[...],
                            preferred_element_type=jnp.float32)

    @pl.when(k == pl.num_programs(2) - 1)
    def _finalize():
        h = acc_ref[...] * nd_ref[...] + b_ref[...]
        if apply_relu:
            h = jnp.maximum(h, 0.0)
        o_ref[...] = h.astype(o_ref.dtype)


def _aggregate_then_transform_kernel(a_ref, x_ref, w_ref, nd_ref, b_ref, o_ref,
                                     acc_ref, *, apply_relu):
    """Aggregate-first: acc[i] += A[i,k] @ Xn[k] per k; finalize once:
       out = (acc @ W) * nd + b (+ ReLU)."""
    k = pl.program_id(2)

    @pl.when(k == 0)
    def _init():
        acc_ref[...] = jnp.zeros_like(acc_ref)

    acc_ref[...] += jnp.dot(a_ref[...], x_ref[...],
                            preferred_element_type=jnp.float32)

    @pl.when(k == pl.num_programs(2) - 1)
    def _finalize():
        # One bf16 rounding of the full aggregation (was once per k step before).
        h = jnp.dot(acc_ref[...].astype(w_ref.dtype), w_ref[...],
                    preferred_element_type=jnp.float32)
        h = h * nd_ref[...] + b_ref[...]
        if apply_relu:
            h = jnp.maximum(h, 0.0)
        o_ref[...] = h.astype(o_ref.dtype)


# ---------------- layer wrapper ----------------

def gcn_layer(a, x, w, b, *, apply_relu, out_dtype=jnp.float32,
              return_padded=False, tm=256, tn=512, tk=2048,
              compute_dtype=jnp.bfloat16):
    """Fused GraphConv (norm='both') on a dense MFG adjacency a: [D, S].

    x may arrive zero-padded from a previous layer (extra rows/cols are inert
    against the zero-padded adjacency/weights). With return_padded=True the
    zero-padded [d_pad, n_pad] output is returned so layers chain without a
    slice + re-pad round trip.
    """
    D, S = a.shape
    F_in, F_out = w.shape

    n_pad = _round_up(F_out, 128)
    f_in_pad = _round_up(F_in, 128)
    # With XW hoisted out of the kernel, transform-first is preferred whenever it
    # does not widen the A contraction.
    transform_first = n_pad <= f_in_pad

    # ---- tile selection ----------------------------------------------------
    vmem_limit = _vmem_limit_bytes()
    d_pad, tm_ = _pad_and_tile(D, tm, 16)           # 16: bf16 sublane packing

    # A tiles are re-fetched from HBM once per j index; A is the dominant HBM
    # stream, so keep grid_n == 1 whenever F_out is modest.
    if n_pad <= 512:
        tn_ = n_pad
    else:
        n_pad, tn_ = _pad_and_tile(F_out, tn, 128)

    # Shrink the reduction tile until the double-buffered A + feature blocks fit
    # comfortably (this also caps the x block when F_in is very wide).
    feat_w = tn_ if transform_first else f_in_pad
    budget = max(vmem_limit // 4, 4 * 1024 * 1024)
    tk_ = tk
    while tk_ > 256 and 2 * 2 * tk_ * (tm_ + feat_w) > budget:
        tk_ //= 2
    s_pad, tk_ = _pad_and_tile(S, tk_, 128)

    grid_m, grid_n, grid_k = d_pad // tm_, n_pad // tn_, s_pad // tk_
    # v7x megacore: expose >= 2 parallel blocks when the layer is big enough.
    if grid_m * grid_n == 1 and tm_ % 32 == 0:
        tm_ //= 2
        grid_m = d_pad // tm_

    # ---- prologue: degree norms from one bf16 read of A (f32 accumulation) --
    a_p = _pad2d(a.astype(compute_dtype), d_pad, s_pad)      # binary -> bf16 exact
    out_deg = jnp.sum(a_p, axis=0, dtype=jnp.float32)         # [s_pad] src out-degree
    in_deg = jnp.sum(a_p, axis=1, dtype=jnp.float32)          # [d_pad] dst in-degree
    norm_src = jax.lax.rsqrt(jnp.maximum(out_deg, 1.0))[:, None]   # [s_pad, 1]
    norm_dst = jax.lax.rsqrt(jnp.maximum(in_deg, 1.0))[:, None]    # [d_pad, 1]

    # ---- features: pre-scale by norm_src, fused into the pad/cast pass ------
    x_p = _fit_rows(_fit_cols(x, f_in_pad), s_pad)
    x_scaled = x_p.astype(jnp.float32) * norm_src

    b_p = _pad2d(b.reshape(1, F_out).astype(jnp.float32), 1, n_pad)
    nd_p = norm_dst                                            # [d_pad, 1] f32

    common = dict(
        out_shape=jax.ShapeDtypeStruct((d_pad, n_pad), out_dtype),
        grid=(grid_m, grid_n, grid_k),
        out_specs=pl.BlockSpec((tm_, tn_), lambda i, j, k: (i, j)),
        compiler_params=pltpu.CompilerParams(
            dimension_semantics=("parallel", "parallel", "arbitrary"),
            vmem_limit_bytes=vmem_limit,
        ),
    )

    if transform_first:
        # XW = (norm_src * x) @ W computed once (depends only on the src/k axis),
        # so the hot kernel is a pure A @ XW accumulation.
        w_p = _pad2d(w.astype(compute_dtype), f_in_pad, n_pad)
        xw = jnp.dot(x_scaled.astype(compute_dtype), w_p,
                     preferred_element_type=jnp.float32).astype(compute_dtype)
        out_p = pl.pallas_call(
            functools.partial(_aggregate_kernel, apply_relu=apply_relu),
            in_specs=[
                pl.BlockSpec((tm_, tk_), lambda i, j, k: (i, k)),      # A tile
                pl.BlockSpec((tk_, tn_), lambda i, j, k: (k, j)),      # XW tile
                pl.BlockSpec((tm_, 1), lambda i, j, k: (i, 0)),        # norm_dst
                pl.BlockSpec((1, tn_), lambda i, j, k: (0, j)),        # bias
            ],
            scratch_shapes=[pltpu.VMEM((tm_, tn_), jnp.float32)],
            **common,
        )(a_p, xw, nd_p, b_p)
    else:
        # Aggregate-first (F_in < F_out): accumulate only A @ x over k; the @W
        # transform runs a single time in the finalize.
        xn = x_scaled.astype(compute_dtype)                     # [s_pad, f_in_pad]
        w_p = _pad2d(w.astype(compute_dtype), f_in_pad, n_pad)
        # TODO(synk): tile F_in as an extra grid axis for extremely wide inputs.
        out_p = pl.pallas_call(
            functools.partial(_aggregate_then_transform_kernel,
                              apply_relu=apply_relu),
            in_specs=[
                pl.BlockSpec((tm_, tk_), lambda i, j, k: (i, k)),          # A tile
                pl.BlockSpec((tk_, f_in_pad), lambda i, j, k: (k, 0)),     # x*norm_src
                pl.BlockSpec((f_in_pad, tn_), lambda i, j, k: (0, j)),     # W
                pl.BlockSpec((tm_, 1), lambda i, j, k: (i, 0)),            # norm_dst
                pl.BlockSpec((1, tn_), lambda i, j, k: (0, j)),            # bias
            ],
            scratch_shapes=[pltpu.VMEM((tm_, f_in_pad), jnp.float32)],
            **common,
        )(a_p, xn, w_p, nd_p, b_p)

    if return_padded:
        return out_p
    return out_p[:D, :F_out]


def gcn_forward(adjs, x, params):
    """Mirrors GCN.forward(mfgs, x) with dense MFG adjacencies."""
    (w0, b0), (w1, b1) = params
    # layer 0: GraphConv(in, hid, activation=relu). The explicit F.relu in the
    # torch forward is idempotent after the in-layer ReLU -> dropped.
    # Hidden activations stay bf16 and zero-padded between layers.
    h = gcn_layer(adjs[0], x, w0, b0, apply_relu=True,
                  out_dtype=jnp.bfloat16, return_padded=True)
    # layer 1: GraphConv(hid, out). h_dst bookkeeping is implicit: A1's columns
    # (src) restrict to mfg1's src nodes and its rows are mfg1's dst nodes.
    return gcn_layer(adjs[1], h, w1, b1, apply_relu=False, out_dtype=jnp.float32)


# ---------------- reference (pure jnp, f32) ----------------

def _gcn_layer_ref(a, x, w, b, *, apply_relu):
    out_deg = jnp.maximum(jnp.sum(a, axis=0, keepdims=True), 1.0)   # [1, S]
    in_deg = jnp.maximum(jnp.sum(a, axis=1, keepdims=True), 1.0)    # [D, 1]
    h = jnp.dot(a, x * jax.lax.rsqrt(out_deg).T)
    h = jnp.dot(h, w) * jax.lax.rsqrt(in_deg) + b
    return jnp.maximum(h, 0.0) if apply_relu else h


def _glorot(key, shape):
    fan_in, fan_out = shape
    limit = (6.0 / (fan_in + fan_out)) ** 0.5
    return jax.random.uniform(key, shape, jnp.float32, -limit, limit)


def _make_mfg_adj(key, num_dst, num_src, p=0.3):
    """Dense MFG adjacency [num_dst, num_src]; dst node d always sees src node d."""
    a = (jax.random.uniform(key, (num_dst, num_src)) < p).astype(jnp.float32)
    eye = jnp.eye(num_dst, num_src, dtype=jnp.float32)
    return jnp.maximum(a, eye)


if __name__ == "__main__":
    # Small synthetic sizes consistent with the module:
    #   mfg0: 32 src -> 16 dst ; mfg1: 16 src -> 8 dst
    #   in_size=16, hid_size=32, out_size=8
    num_src0, num_dst0, num_dst1 = 32, 16, 8
    in_size, hid_size, out_size = 16, 32, 8

    key = jax.random.PRNGKey(0)
    k_x, k_a0, k_a1, k_w0, k_w1 = jax.random.split(key, 5)

    x = jax.random.normal(k_x, (num_src0, in_size), jnp.float32)
    a0 = _make_mfg_adj(k_a0, num_dst0, num_src0)     # mfgs[0]
    a1 = _make_mfg_adj(k_a1, num_dst1, num_dst0)     # mfgs[1]

    w0 = _glorot(k_w0, (in_size, hid_size))
    b0 = jnp.zeros((hid_size,), jnp.float32)
    w1 = _glorot(k_w1, (hid_size, out_size))
    b1 = jnp.zeros((out_size,), jnp.float32)
    params = ((w0, b0), (w1, b1))

    fwd = jax.jit(gcn_forward)
    out = jax.block_until_ready(fwd((a0, a1), x, params))
    assert out.shape == (num_dst1, out_size), out.shape

    # Correctness vs. pure-f32 reference (bf16 MXU inputs -> loose tolerance).
    ref = _gcn_layer_ref(a1, _gcn_layer_ref(a0, x, w0, b0, apply_relu=True),
                         w1, b1, apply_relu=False)
    assert jnp.allclose(out, ref, atol=5e-2, rtol=5e-2), (
        float(jnp.max(jnp.abs(out - ref))))

    print("KERNEL_OK")
</pallas_src>

<mosaic_0001>
module attributes {stable_mosaic.version = 11 : i64} {
  func.func @_aggregate_kernel(%arg0: i32, %arg1: i32, %arg2: i32, %arg3: memref<16x128xbf16, #tpu.memory_space<vmem>>, %arg4: memref<128x128xbf16, #tpu.memory_space<vmem>>, %arg5: memref<16x1xf32, #tpu.memory_space<vmem>>, %arg6: memref<1x128xf32, #tpu.memory_space<vmem>>, %arg7: memref<16x128xbf16, #tpu.memory_space<vmem>>, %arg8: memref<16x128xf32, #tpu.memory_space<vmem>>) attributes {dimension_semantics = [#tpu.dimension_semantics<parallel>, #tpu.dimension_semantics<parallel>, #tpu.dimension_semantics<arbitrary>], iteration_bounds = array<i64: 1, 1, 1>, scalar_prefetch = 0 : i64, scratch_operands = 1 : i64, tpu.core_type = #tpu.core_type<tc>, window_params = [{transform_indices = @transform_0, window_bounds = array<i64: 16, 128>}, {transform_indices = @transform_1, window_bounds = array<i64: 128, 128>}, {transform_indices = @transform_2, window_bounds = array<i64: 16, 1>}, {transform_indices = @transform_3, window_bounds = array<i64: 1, 128>}, {transform_indices = @transform_4, window_bounds = array<i64: 16, 128>}]} {
    %c0_i32 = arith.constant 0 : i32
    %0 = arith.cmpi eq, %arg2, %c0_i32 : i32
    %1 = arith.extui %0 : i1 to i32
    %c0_i32_0 = arith.constant 0 : i32
    %2 = arith.cmpi ne, %1, %c0_i32_0 : i32
    scf.if %2 {
      %cst_10 = arith.constant 0.000000e+00 : f32
      %12 = vector.broadcast %cst_10 : f32 to vector<16x128xf32>
      %c0_11 = arith.constant 0 : index
      %c0_12 = arith.constant 0 : index
      %13 = vector.load %arg8[%c0_11, %c0_12] : memref<16x128xf32, #tpu.memory_space<vmem>>, vector<16x128xf32>
      tpu.vector_store %arg8[%c0_11, %c0_12], %12 {strides = array<i32>} : memref<16x128xf32, #tpu.memory_space<vmem>>, vector<16x128xf32>,
    } else {
    }
    %c0 = arith.constant 0 : index
    %c0_1 = arith.constant 0 : index
    %3 = vector.load %arg8[%c0, %c0_1] : memref<16x128xf32, #tpu.memory_space<vmem>>, vector<16x128xf32>
    %c0_2 = arith.constant 0 : index
    %c0_3 = arith.constant 0 : index
    %4 = vector.load %arg3[%c0_2, %c0_3] : memref<16x128xbf16, #tpu.memory_space<vmem>>, vector<16x128xbf16>
    %c0_4 = arith.constant 0 : index
    %c0_5 = arith.constant 0 : index
    %5 = vector.load %arg4[%c0_4, %c0_5] : memref<128x128xbf16, #tpu.memory_space<vmem>>, vector<128x128xbf16>
    %cst = arith.constant dense<0.000000e+00> : vector<16x128xf32>
    %6 = tpu.matmul %4, %5, %cst {dimension_numbers = #tpu.dot_dimension_numbers<[1], [0], [0], [1], [0, 0, 1, 1], [], []>} : vector<16x128xbf16>, vector<128x128xbf16>, vector<16x128xf32> -> vector<16x128xf32>
    %7 = arith.addf %3, %6 : vector<16x128xf32>
    %c0_6 = arith.constant 0 : index
    %c0_7 = arith.constant 0 : index
    %8 = vector.load %arg8[%c0_6, %c0_7] : memref<16x128xf32, #tpu.memory_space<vmem>>, vector<16x128xf32>
    tpu.vector_store %arg8[%c0_6, %c0_7], %7 {strides = array<i32>} : memref<16x128xf32, #tpu.memory_space<vmem>>, vector<16x128xf32>,
    %c0_i32_8 = arith.constant 0 : i32
    %9 = arith.cmpi eq, %arg2, %c0_i32_8 : i32
    %10 = arith.extui %9 : i1 to i32
    %c0_i32_9 = arith.constant 0 : i32
    %11 = arith.cmpi ne, %10, %c0_i32_9 : i32
    scf.if %11 {
      %c0_10 = arith.constant 0 : index
      %c0_11 = arith.constant 0 : index
      %12 = vector.load %arg8[%c0_10, %c0_11] : memref<16x128xf32, #tpu.memory_space<vmem>>, vector<16x128xf32>
      %c0_12 = arith.constant 0 : index
      %c0_13 = arith.constant 0 : index
      %13 = vector.load %arg5[%c0_12, %c0_13] : memref<16x1xf32, #tpu.memory_space<vmem>>, vector<16x1xf32>
      %14 = vector.broadcast %13 : vector<16x1xf32> to vector<16x128xf32>
      %15 = arith.mulf %12, %14 : vector<16x128xf32>
      %c0_14 = arith.constant 0 : index
      %c0_15 = arith.constant 0 : index
      %16 = vector.load %arg6[%c0_14, %c0_15] : memref<1x128xf32, #tpu.memory_space<vmem>>, vector<1x128xf32>
      %17 = vector.broadcast %16 : vector<1x128xf32> to vector<16x128xf32>
      %18 = arith.addf %15, %17 : vector<16x128xf32>
      %cst_16 = arith.constant 0.000000e+00 : f32
      %19 = vector.broadcast %cst_16 : f32 to vector<16x128xf32>
      %20 = arith.maximumf %18, %19 : vector<16x128xf32>
      %21 = arith.truncf %20 : vector<16x128xf32> to vector<16x128xbf16>
      %c0_17 = arith.constant 0 : index
      %c0_18 = arith.constant 0 : index
      %22 = vector.load %arg7[%c0_17, %c0_18] : memref<16x128xbf16, #tpu.memory_space<vmem>>, vector<16x128xbf16>
      tpu.vector_store %arg7[%c0_17, %c0_18], %21 {strides = array<i32>} : memref<16x128xbf16, #tpu.memory_space<vmem>>, vector<16x128xbf16>,
    } else {
    }
    return
  }
  func.func @transform_0(%arg0: i32, %arg1: i32, %arg2: i32) -> (i32, i32) {
    %c0_i32 = arith.constant 0 : i32
    return %arg0, %arg2 : i32, i32
  }
  func.func @transform_1(%arg0: i32, %arg1: i32, %arg2: i32) -> (i32, i32) {
    %c0_i32 = arith.constant 0 : i32
    return %arg2, %arg1 : i32, i32
  }
  func.func @transform_2(%arg0: i32, %arg1: i32, %arg2: i32) -> (i32, i32) {
    %c0_i32 = arith.constant 0 : i32
    %c0_i32_0 = arith.constant 0 : i32
    return %arg0, %c0_i32 : i32, i32
  }
  func.func @transform_3(%arg0: i32, %arg1: i32, %arg2: i32) -> (i32, i32) {
    %c0_i32 = arith.constant 0 : i32
    %c0_i32_0 = arith.constant 0 : i32
    return %c0_i32, %arg1 : i32, i32
  }
  func.func @transform_4(%arg0: i32, %arg1: i32, %arg2: i32) -> (i32, i32) {
    %c0_i32 = arith.constant 0 : i32
    return %arg0, %arg1 : i32, i32
  }
}

module attributes {stable_mosaic.version = 11 : i64} {
  func.func @_aggregate_kernel(%arg0: i32, %arg1: i32, %arg2: i32, %arg3: memref<16x128xbf16, #tpu.memory_space<vmem>>, %arg4: memref<128x128xbf16, #tpu.memory_space<vmem>>, %arg5: memref<16x1xf32, #tpu.memory_space<vmem>>, %arg6: memref<1x128xf32, #tpu.memory_space<vmem>>, %arg7: memref<16x128xf32, #tpu.memory_space<vmem>>, %arg8: memref<16x128xf32, #tpu.memory_space<vmem>>) attributes {dimension_semantics = [#tpu.dimension_semantics<parallel>, #tpu.dimension_semantics<parallel>, #tpu.dimension_semantics<arbitrary>], iteration_bounds = array<i64: 1, 1, 1>, scalar_prefetch = 0 : i64, scratch_operands = 1 : i64, tpu.core_type = #tpu.core_type<tc>, window_params = [{transform_indices = @transform_0, window_bounds = array<i64: 16, 128>}, {transform_indices = @transform_1, window_bounds = array<i64: 128, 128>}, {transform_indices = @transform_2, window_bounds = array<i64: 16, 1>}, {transform_indices = @transform_3, window_bounds = array<i64: 1, 128>}, {transform_indices = @transform_4, window_bounds = array<i64: 16, 128>}]} {
    %c0_i32 = arith.constant 0 : i32
    %0 = arith.cmpi eq, %arg2, %c0_i32 : i32
    %1 = arith.extui %0 : i1 to i32
    %c0_i32_0 = arith.constant 0 : i32
    %2 = arith.cmpi ne, %1, %c0_i32_0 : i32
    scf.if %2 {
      %cst_10 = arith.constant 0.000000e+00 : f32
      %12 = vector.broadcast %cst_10 : f32 to vector<16x128xf32>
      %c0_11 = arith.constant 0 : index
      %c0_12 = arith.constant 0 : index
      %13 = vector.load %arg8[%c0_11, %c0_12] : memref<16x128xf32, #tpu.memory_space<vmem>>, vector<16x128xf32>
      tpu.vector_store %arg8[%c0_11, %c0_12], %12 {strides = array<i32>} : memref<16x128xf32, #tpu.memory_space<vmem>>, vector<16x128xf32>,
    } else {
    }
    %c0 = arith.constant 0 : index
    %c0_1 = arith.constant 0 : index
    %3 = vector.load %arg8[%c0, %c0_1] : memref<16x128xf32, #tpu.memory_space<vmem>>, vector<16x128xf32>
    %c0_2 = arith.constant 0 : index
    %c0_3 = arith.constant 0 : index
    %4 = vector.load %arg3[%c0_2, %c0_3] : memref<16x128xbf16, #tpu.memory_space<vmem>>, vector<16x128xbf16>
    %c0_4 = arith.constant 0 : index
    %c0_5 = arith.constant 0 : index
    %5 = vector.load %arg4[%c0_4, %c0_5] : memref<128x128xbf16, #tpu.memory_space<vmem>>, vector<128x128xbf16>
    %cst = arith.constant dense<0.000000e+00> : vector<16x128xf32>
    %6 = tpu.matmul %4, %5, %cst {dimension_numbers = #tpu.dot_dimension_numbers<[1], [0], [0], [1], [0, 0, 1, 1], [], []>} : vector<16x128xbf16>, vector<128x128xbf16>, vector<16x128xf32> -> vector<16x128xf32>
    %7 = arith.addf %3, %6 : vector<16x128xf32>
    %c0_6 = arith.constant 0 : index
    %c0_7 = arith.constant 0 : index
    %8 = vector.load %arg8[%c0_6, %c0_7] : memref<16x128xf32, #tpu.memory_space<vmem>>, vector<16x128xf32>
    tpu.vector_store %arg8[%c0_6, %c0_7], %7 {strides = array<i32>} : memref<16x128xf32, #tpu.memory_space<vmem>>, vector<16x128xf32>,
    %c0_i32_8 = arith.constant 0 : i32
    %9 = arith.cmpi eq, %arg2, %c0_i32_8 : i32
    %10 = arith.extui %9 : i1 to i32
    %c0_i32_9 = arith.constant 0 : i32
    %11 = arith.cmpi ne, %10, %c0_i32_9 : i32
    scf.if %11 {
      %c0_10 = arith.constant 0 : index
      %c0_11 = arith.constant 0 : index
      %12 = vector.load %arg8[%c0_10, %c0_11] : memref<16x128xf32, #tpu.memory_space<vmem>>, vector<16x128xf32>
      %c0_12 = arith.constant 0 : index
      %c0_13 = arith.constant 0 : index
      %13 = vector.load %arg5[%c0_12, %c0_13] : memref<16x1xf32, #tpu.memory_space<vmem>>, vector<16x1xf32>
      %14 = vector.broadcast %13 : vector<16x1xf32> to vector<16x128xf32>
      %15 = arith.mulf %12, %14 : vector<16x128xf32>
      %c0_14 = arith.constant 0 : index
      %c0_15 = arith.constant 0 : index
      %16 = vector.load %arg6[%c0_14, %c0_15] : memref<1x128xf32, #tpu.memory_space<vmem>>, vector<1x128xf32>
      %17 = vector.broadcast %16 : vector<1x128xf32> to vector<16x128xf32>
      %18 = arith.addf %15, %17 : vector<16x128xf32>
      %c0_16 = arith.constant 0 : index
      %c0_17 = arith.constant 0 : index
      %19 = vector.load %arg7[%c0_16, %c0_17] : memref<16x128xf32, #tpu.memory_space<vmem>>, vector<16x128xf32>
      tpu.vector_store %arg7[%c0_16, %c0_17], %18 {strides = array<i32>} : memref<16x128xf32, #tpu.memory_space<vmem>>, vector<16x128xf32>,
    } else {
    }
    return
  }
  func.func @transform_0(%arg0: i32, %arg1: i32, %arg2: i32) -> (i32, i32) {
    %c0_i32 = arith.constant 0 : i32
    return %arg0, %arg2 : i32, i32
  }
  func.func @transform_1(%arg0: i32, %arg1: i32, %arg2: i32) -> (i32, i32) {
    %c0_i32 = arith.constant 0 : i32
    return %arg2, %arg1 : i32, i32
  }
  func.func @transform_2(%arg0: i32, %arg1: i32, %arg2: i32) -> (i32, i32) {
    %c0_i32 = arith.constant 0 : i32
    %c0_i32_0 = arith.constant 0 : i32
    return %arg0, %c0_i32 : i32, i32
  }
  func.func @transform_3(%arg0: i32, %arg1: i32, %arg2: i32) -> (i32, i32) {
    %c0_i32 = arith.constant 0 : i32
    %c0_i32_0 = arith.constant 0 : i32
    return %c0_i32, %arg1 : i32, i32
  }
  func.func @transform_4(%arg0: i32, %arg1: i32, %arg2: i32) -> (i32, i32) {
    %c0_i32 = arith.constant 0 : i32
    return %arg0, %arg1 : i32, i32
  }
}

</mosaic_0001>

<llo_original>
// kernel: gcn_forward.3
$region0: #{gcn_forward.3}
  #allocation0 [shape = 'u32[]', space=smem, size = 0x4, offset = 0x4, fixed_abs, tag = 'smem constant byte address 0x4 - core index']
  #allocation1 [shape = 'u32[72,128]{1,0:T(1,128)}', space=vmem, size = 0x9000, scoped, tag = 'internal scratch']
  #allocation2 [shape = 'f32[16,128]{1,0:T(8,128)}', space=vmem, size = 0x2000, scoped, tag = 'scratch operand']
  %s0 = inlined_call_operand.vmem [shape: bf16[16,128], index: 0, kind: input, shape index: {}]
  %s1 = inlined_call_operand.vmem [shape: bf16[128,128], index: 1, kind: input, shape index: {}]
  %s2 = inlined_call_operand.vmem [shape: f32[16,1], index: 2, kind: input, shape index: {}]
  %s3 = inlined_call_operand.vmem [shape: f32[1,128], index: 3, kind: input, shape index: {}]
  %s4 = inlined_call_operand.vmem [shape: f32[16,128], index: 4, kind: output, shape index: {}]
  %s5 = sld [smem:[#allocation0]]
  $region34: #{gcn_forward.3} parent=0
    _
  %s7 = ssub.s32 1, %s5
  %s8 = scalar_select 0, %s7, %s5
  // Predicated region
  $region2: #{gcn_forward.3} parent=0 // pred_check
    _
  $region3: #{gcn_forward.3} parent=0 // pred_check_branch
    %10 = sbr.rel (0) target = $region5
  $region4: #{gcn_forward.3} parent=0 // pred_region
    _
  $region5: #{gcn_forward.3} parent=0 // pred_fallthru
    _
  // Predicated region
  $region6: #{gcn_forward.3} parent=0 // pred_check
    _
  $region7: #{gcn_forward.3} parent=0 // pred_check_branch
    %12 = sbr.rel (0) target = $region9
  $region8: #{gcn_forward.3} parent=0 // pred_region
    _
  $region9: #{gcn_forward.3} parent=0 // pred_fallthru
    _
  // Predicated region
  $region10: #{gcn_forward.3} parent=0 // pred_check
    _
  $region11: #{gcn_forward.3} parent=0 // pred_check_branch
    %14 = sbr.rel (0) target = $region13
  $region12: #{gcn_forward.3} parent=0 // pred_region
    _
  $region13: #{gcn_forward.3} parent=0 // pred_fallthru
    _
  // Predicated region
  $region14: #{gcn_forward.3} parent=0 // pred_check
    _
  $region15: #{gcn_forward.3} parent=0 // pred_check_branch
    %16 = sbr.rel (0) target = $region17
  $region16: #{gcn_forward.3} parent=0 // pred_region
    _
  $region17: #{gcn_forward.3} parent=0 // pred_fallthru
    _
  %p17 = scmp.eq.s32.totalorder 0, 0
  // Predicated region
  $region18: #{gcn_forward.3} parent=0 // pred_check
    %p18 = pneg %p17
  $region19: #{gcn_forward.3} parent=0 // pred_check_branch
    %20 = sbr.rel (%p18) target = $region21
  $region20: #{gcn_forward.3} parent=0 // pred_region
    %21 = vst [vmem:[#allocation2] sm:$0xff] 0.0
    %22 = vst [vmem:[#allocation2 + $0x8] sm:$0xff] 0.0
  $region21: #{gcn_forward.3} parent=0 // pred_fallthru
    _
  %v23 = vld [vmem:[#allocation2] sm:$0xff]
  %v24 = vld [vmem:[#allocation2 + $0x8] sm:$0xff]
  %v25 = vld [vmem:[%s0] sm:$0xf]
  %v26 = vld [vmem:[%s0 + $0x4] sm:$0xf]
  %v27 = vld [vmem:[%s1] sm:$0xf]
  %v28 = vld [vmem:[%s1 + $0x4] sm:$0xf]
  %v29 = vld [vmem:[%s1 + $0x8] sm:$0xf]
  %v30 = vld [vmem:[%s1 + $0xc] sm:$0xf]
  %v31 = vld [vmem:[%s1 + $0x10] sm:$0xf]
  %v32 = vld [vmem:[%s1 + $0x14] sm:$0xf]
  %v33 = vld [vmem:[%s1 + $0x18] sm:$0xf]
  %v34 = vld [vmem:[%s1 + $0x1c] sm:$0xf]
  %v35 = vld [vmem:[%s1 + $0x20] sm:$0xf]
  %v36 = vld [vmem:[%s1 + $0x24] sm:$0xf]
  %v37 = vld [vmem:[%s1 + $0x28] sm:$0xf]
  %v38 = vld [vmem:[%s1 + $0x2c] sm:$0xf]
  %v39 = vld [vmem:[%s1 + $0x30] sm:$0xf]
  %v40 = vld [vmem:[%s1 + $0x34] sm:$0xf]
  %v41 = vld [vmem:[%s1 + $0x38] sm:$0xf]
  %v42 = vld [vmem:[%s1 + $0x3c] sm:$0xf]
  %v45 = vunpack.c.l.b16 %v25
  %v46 = vunpack.c.l.b16 %v26
  %v47 = vpack.c.b16 %v46, %v45
  %v65 = vunpack.c.l.b16 %v27
  %v66 = vunpack.c.l.b16 %v28
  %v67 = vunpack.c.l.b16 %v29
  %v68 = vunpack.c.l.b16 %v30
  %v69 = vunpack.c.l.b16 %v31
  %v70 = vunpack.c.l.b16 %v32
  %v71 = vunpack.c.l.b16 %v33
  %v72 = vunpack.c.l.b16 %v34
  %v73 = vunpack.c.l.b16 %v35
  %v74 = vunpack.c.l.b16 %v36
  %v75 = vunpack.c.l.b16 %v37
  %v76 = vunpack.c.l.b16 %v38
  %v77 = vunpack.c.l.b16 %v39
  %v78 = vunpack.c.l.b16 %v40
  %v79 = vunpack.c.l.b16 %v41
  %v80 = vunpack.c.l.b16 %v42
  %v81 = vpack.c.b16 %v66, %v65
  %v82 = vpack.c.b16 %v68, %v67
  %v83 = vpack.c.b16 %v70, %v69
  %v84 = vpack.c.b16 %v72, %v71
  %v85 = vpack.c.b16 %v74, %v73
  %v86 = vpack.c.b16 %v76, %v75
  %v87 = vpack.c.b16 %v78, %v77
  %v88 = vpack.c.b16 %v80, %v79
  %97 = vmatpush.bf16.msra.mxu0 %v88
  %98 = vmatpush.bf16.msra.mxu0 %v87
  %99 = vmatpush.bf16.msra.mxu0 %v86
  %100 = vmatpush.bf16.msra.mxu0 %v85
  %101 = vmatpush.bf16.msra.mxu0 %v84
  %102 = vmatpush.bf16.msra.mxu0 %v83
  %103 = vmatpush.bf16.msra.mxu0 %v82
  %104 = vmatpush.bf16.msra.mxu0 %v81
  %105 = vmatmul.bf16.gmra.mxu0 %v47
  %v106 = vpop.f32.mrf.mxu0
  %v107 = vadd.f32 0.0, %v106
  %v108 = vpop.f32.mrf.mxu0
  %v109 = vadd.f32 0.0, %v108
  %110 = vdwg.mxu0
  %v111 = vadd.f32 %v23, %v107
  %v112 = vadd.f32 %v24, %v109
  %113 = vst [vmem:[#allocation2] sm:$0xff] %v111
  %114 = vst [vmem:[#allocation2 + $0x8] sm:$0xff] %v112
  // Predicated region
  $region22: #{gcn_forward.3} parent=0 // pred_check
    %p115 = pneg %p17
  $region23: #{gcn_forward.3} parent=0 // pred_check_branch
    %117 = sbr.rel (%p115) target = $region25
  $region24: #{gcn_forward.3} parent=0 // pred_region
    %v118 = vld [vmem:[#allocation2] sm:$0xff]
    %v119 = vld [vmem:[#allocation2 + $0x8] sm:$0xff]
    %v120 = vld [vmem:[%s2] sm:$0xff]
    %v121 = vld [vmem:[%s2 + $0x8] sm:$0xff]
    %123 = vset.pattern.permute.xlu0 0
    %124 = vperm.xlu0 %123, %v120
    %v125 = vpop.permute.xlu0 %124
    %128 = vset.pattern.permute.xlu0 0
    %129 = vperm.xlu0 %128, %v121
    %v130 = vpop.permute.xlu0 %129
    %v132 = vmul.f32 %v118, %v125
    %v133 = vmul.f32 %v119, %v130
    %v134 = vld [vmem:[%s3] sm:$0x1]
    %v136 = vperm.slane %v134, 0
    %v138 = vadd.f32 %v132, %v136
    %v139 = vadd.f32 %v133, %v136
    %140 = vst [vmem:[%s4] sm:$0xff] %v138
    %141 = vst [vmem:[%s4 + $0x8] sm:$0xff] %v139
  $region25: #{gcn_forward.3} parent=0 // pred_fallthru
    _
  // Predicated region
  $region26: #{gcn_forward.3} parent=0 // pred_check
    _
  $region27: #{gcn_forward.3} parent=0 // pred_check_branch
    %143 = sbr.rel (0) target = $region29
  $region28: #{gcn_forward.3} parent=0 // pred_region
    _
  $region29: #{gcn_forward.3} parent=0 // pred_fallthru
    _
  // Predicated region
  $region30: #{gcn_forward.3} parent=0 // pred_check
    _
  $region31: #{gcn_forward.3} parent=0 // pred_check_branch
    %145 = sbr.rel (0) target = $region33
  $region32: #{gcn_forward.3} parent=0 // pred_region
    _
  $region33: #{gcn_forward.3} parent=0 // pred_fallthru
    _

// kernel: gcn_forward.2
$region0: #{gcn_forward.2}
  #allocation0 [shape = 'u32[]', space=smem, size = 0x4, offset = 0x4, fixed_abs, tag = 'smem constant byte address 0x4 - core index']
  #allocation1 [shape = 'u32[72,128]{1,0:T(1,128)}', space=vmem, size = 0x9000, scoped, tag = 'internal scratch']
  #allocation2 [shape = 'f32[16,128]{1,0:T(8,128)}', space=vmem, size = 0x2000, scoped, tag = 'scratch operand']
  %s0 = inlined_call_operand.vmem [shape: bf16[16,128], index: 0, kind: input, shape index: {}]
  %s1 = inlined_call_operand.vmem [shape: bf16[128,128], index: 1, kind: input, shape index: {}]
  %s2 = inlined_call_operand.vmem [shape: f32[16,1], index: 2, kind: input, shape index: {}]
  %s3 = inlined_call_operand.vmem [shape: f32[1,128], index: 3, kind: input, shape index: {}]
  %s4 = inlined_call_operand.vmem [shape: bf16[16,128], index: 4, kind: output, shape index: {}]
  %s5 = sld [smem:[#allocation0]]
  $region34: #{gcn_forward.2} parent=0
    _
  %s7 = ssub.s32 1, %s5
  %s8 = scalar_select 0, %s7, %s5
  // Predicated region
  $region2: #{gcn_forward.2} parent=0 // pred_check
    _
  $region3: #{gcn_forward.2} parent=0 // pred_check_branch
    %10 = sbr.rel (0) target = $region5
  $region4: #{gcn_forward.2} parent=0 // pred_region
    _
  $region5: #{gcn_forward.2} parent=0 // pred_fallthru
    _
  // Predicated region
  $region6: #{gcn_forward.2} parent=0 // pred_check
    _
  $region7: #{gcn_forward.2} parent=0 // pred_check_branch
    %12 = sbr.rel (0) target = $region9
  $region8: #{gcn_forward.2} parent=0 // pred_region
    _
  $region9: #{gcn_forward.2} parent=0 // pred_fallthru
    _
  // Predicated region
  $region10: #{gcn_forward.2} parent=0 // pred_check
    _
  $region11: #{gcn_forward.2} parent=0 // pred_check_branch
    %14 = sbr.rel (0) target = $region13
  $region12: #{gcn_forward.2} parent=0 // pred_region
    _
  $region13: #{gcn_forward.2} parent=0 // pred_fallthru
    _
  // Predicated region
  $region14: #{gcn_forward.2} parent=0 // pred_check
    _
  $region15: #{gcn_forward.2} parent=0 // pred_check_branch
    %16 = sbr.rel (0) target = $region17
  $region16: #{gcn_forward.2} parent=0 // pred_region
    _
  $region17: #{gcn_forward.2} parent=0 // pred_fallthru
    _
  %p17 = scmp.eq.s32.totalorder 0, 0
  // Predicated region
  $region18: #{gcn_forward.2} parent=0 // pred_check
    %p18 = pneg %p17
  $region19: #{gcn_forward.2} parent=0 // pred_check_branch
    %20 = sbr.rel (%p18) target = $region21
  $region20: #{gcn_forward.2} parent=0 // pred_region
    %21 = vst [vmem:[#allocation2] sm:$0xff] 0.0
    %22 = vst [vmem:[#allocation2 + $0x8] sm:$0xff] 0.0
  $region21: #{gcn_forward.2} parent=0 // pred_fallthru
    _
  %v23 = vld [vmem:[#allocation2] sm:$0xff]
  %v24 = vld [vmem:[#allocation2 + $0x8] sm:$0xff]
  %v25 = vld [vmem:[%s0] sm:$0xf]
  %v26 = vld [vmem:[%s0 + $0x4] sm:$0xf]
  %v27 = vld [vmem:[%s1] sm:$0xf]
  %v28 = vld [vmem:[%s1 + $0x4] sm:$0xf]
  %v29 = vld [vmem:[%s1 + $0x8] sm:$0xf]
  %v30 = vld [vmem:[%s1 + $0xc] sm:$0xf]
  %v31 = vld [vmem:[%s1 + $0x10] sm:$0xf]
  %v32 = vld [vmem:[%s1 + $0x14] sm:$0xf]
  %v33 = vld [vmem:[%s1 + $0x18] sm:$0xf]
  %v34 = vld [vmem:[%s1 + $0x1c] sm:$0xf]
  %v35 = vld [vmem:[%s1 + $0x20] sm:$0xf]
  %v36 = vld [vmem:[%s1 + $0x24] sm:$0xf]
  %v37 = vld [vmem:[%s1 + $0x28] sm:$0xf]
  %v38 = vld [vmem:[%s1 + $0x2c] sm:$0xf]
  %v39 = vld [vmem:[%s1 + $0x30] sm:$0xf]
  %v40 = vld [vmem:[%s1 + $0x34] sm:$0xf]
  %v41 = vld [vmem:[%s1 + $0x38] sm:$0xf]
  %v42 = vld [vmem:[%s1 + $0x3c] sm:$0xf]
  %v45 = vunpack.c.l.b16 %v25
  %v46 = vunpack.c.l.b16 %v26
  %v47 = vpack.c.b16 %v46, %v45
  %v65 = vunpack.c.l.b16 %v27
  %v66 = vunpack.c.l.b16 %v28
  %v67 = vunpack.c.l.b16 %v29
  %v68 = vunpack.c.l.b16 %v30
  %v69 = vunpack.c.l.b16 %v31
  %v70 = vunpack.c.l.b16 %v32
  %v71 = vunpack.c.l.b16 %v33
  %v72 = vunpack.c.l.b16 %v34
  %v73 = vunpack.c.l.b16 %v35
  %v74 = vunpack.c.l.b16 %v36
  %v75 = vunpack.c.l.b16 %v37
  %v76 = vunpack.c.l.b16 %v38
  %v77 = vunpack.c.l.b16 %v39
  %v78 = vunpack.c.l.b16 %v40
  %v79 = vunpack.c.l.b16 %v41
  %v80 = vunpack.c.l.b16 %v42
  %v81 = vpack.c.b16 %v66, %v65
  %v82 = vpack.c.b16 %v68, %v67
  %v83 = vpack.c.b16 %v70, %v69
  %v84 = vpack.c.b16 %v72, %v71
  %v85 = vpack.c.b16 %v74, %v73
  %v86 = vpack.c.b16 %v76, %v75
  %v87 = vpack.c.b16 %v78, %v77
  %v88 = vpack.c.b16 %v80, %v79
  %97 = vmatpush.bf16.msra.mxu0 %v88
  %98 = vmatpush.bf16.msra.mxu0 %v87
  %99 = vmatpush.bf16.msra.mxu0 %v86
  %100 = vmatpush.bf16.msra.mxu0 %v85
  %101 = vmatpush.bf16.msra.mxu0 %v84
  %102 = vmatpush.bf16.msra.mxu0 %v83
  %103 = vmatpush.bf16.msra.mxu0 %v82
  %104 = vmatpush.bf16.msra.mxu0 %v81
  %105 = vmatmul.bf16.gmra.mxu0 %v47
  %v106 = vpop.f32.mrf.mxu0
  %v107 = vadd.f32 0.0, %v106
  %v108 = vpop.f32.mrf.mxu0
  %v109 = vadd.f32 0.0, %v108
  %110 = vdwg.mxu0
  %v111 = vadd.f32 %v23, %v107
  %v112 = vadd.f32 %v24, %v109
  %113 = vst [vmem:[#allocation2] sm:$0xff] %v111
  %114 = vst [vmem:[#allocation2 + $0x8] sm:$0xff] %v112
  // Predicated region
  $region22: #{gcn_forward.2} parent=0 // pred_check
    %p115 = pneg %p17
  $region23: #{gcn_forward.2} parent=0 // pred_check_branch
    %117 = sbr.rel (%p115) target = $region25
  $region24: #{gcn_forward.2} parent=0 // pred_region
    %v118 = vld [vmem:[#allocation2] sm:$0xff]
    %v119 = vld [vmem:[#allocation2 + $0x8] sm:$0xff]
    %v120 = vld [vmem:[%s2] sm:$0xff]
    %v121 = vld [vmem:[%s2 + $0x8] sm:$0xff]
    %123 = vset.pattern.permute.xlu0 0
    %124 = vperm.xlu0 %123, %v120
    %v125 = vpop.permute.xlu0 %124
    %128 = vset.pattern.permute.xlu0 0
    %129 = vperm.xlu0 %128, %v121
    %v130 = vpop.permute.xlu0 %129
    %v132 = vmul.f32 %v118, %v125
    %v133 = vmul.f32 %v119, %v130
    %v134 = vld [vmem:[%s3] sm:$0x1]
    %v136 = vperm.slane %v134, 0
    %v138 = vadd.f32 %v132, %v136
    %v139 = vadd.f32 %v133, %v136
    %v140 = vmax.f32 %v138, 0.0
    %v141 = vmax.f32 %v139, 0.0
    %v142 = vpack.c.bf16 %v140, %v140
    %v143 = vpack.c.bf16 %v141, %v141
    %144 = vst [vmem:[%s4] sm:$0xf] %v142
    %145 = vst [vmem:[%s4 + $0x4] sm:$0xf] %v143
  $region25: #{gcn_forward.2} parent=0 // pred_fallthru
    _
  // Predicated region
  $region26: #{gcn_forward.2} parent=0 // pred_check
    _
  $region27: #{gcn_forward.2} parent=0 // pred_check_branch
    %147 = sbr.rel (0) target = $region29
  $region28: #{gcn_forward.2} parent=0 // pred_region
    _
  $region29: #{gcn_forward.2} parent=0 // pred_fallthru
    _
  // Predicated region
  $region30: #{gcn_forward.2} parent=0 // pred_check
    _
  $region31: #{gcn_forward.2} parent=0 // pred_check_branch
    %149 = sbr.rel (0) target = $region33
  $region32: #{gcn_forward.2} parent=0 // pred_region
    _
  $region33: #{gcn_forward.2} parent=0 // pred_fallthru
    _

</llo_original>
